<compile_context>
chip_gen: v5e
topology: v5e:2x2
jax: 0.10.0
libtpu: 0.0.40
codegen_flags: <defaults>
</compile_context>

<pallas_src>
import functools

import numpy as np
import jax
import jax.numpy as jnp
from jax.experimental import pallas as pl
from jax.experimental.pallas import tpu as pltpu


def _round_up(x, m):
    return ((x + m - 1) // m) * m


def _cdiv(a, b):
    return -(-a // b)


def _pc_kernel(*refs, use_bias, activation):
    # Signature: (x_ref, w_ref, [b_ref,] o_ref)
    if use_bias:
        x_ref, w_ref, b_ref, o_ref = refs
    else:
        x_ref, w_ref, o_ref = refs
        b_ref = None

    k = pl.program_id(1)

    @pl.when(k == 0)
    def _():
        o_ref[...] = jnp.zeros_like(o_ref)

    # bf16 x bf16 -> f32, accumulated directly into the VMEM-resident f32 output
    # block (its block index is constant over the K axis).
    o_ref[...] += jnp.dot(x_ref[...], w_ref[...],
                          preferred_element_type=jnp.float32)

    @pl.when(k == pl.num_programs(1) - 1)
    def _():
        out = o_ref[...]
        if use_bias:
            out = out + b_ref[...]
        if activation == "relu":
            out = jnp.maximum(out, 0.0)
        elif activation == "tanh":
            out = jnp.tanh(out)
        elif activation is not None:  # anything else -> sigmoid (matches PyTorch)
            out = jax.nn.sigmoid(out)
        o_ref[...] = out


class PartialConnectionPallas:
    """JAX/Pallas port of PartialConnection (forward pass)."""

    INPUT_DIMS_MAP = [8912, 17824, 35649, 71299]
    _TB_MAX = 512  # max batch-tile rows

    def __init__(self, adjlist, count=None, activation=None, use_bias=True,
                 input_dim=None, key=None):
        assert len(adjlist) >= 1
        self.units = len(adjlist)
        self.activation = activation
        self.use_bias = use_bias
        self.adjlist = adjlist
        if input_dim is None:
            input_dim = self.INPUT_DIMS_MAP[count]
        self.input_dim = input_dim

        # Edge enumeration identical to gen_adjmat_and_reshapemat.
        edge_rows, edge_cols = [], []
        for u, adj in enumerate(adjlist):
            for j in adj:
                edge_rows.append(u)
                edge_cols.append(j)
        E = len(edge_cols)
        self.num_edges_adjlist = E
        rows = jnp.asarray(np.asarray(edge_rows, dtype=np.int32))
        cols = jnp.asarray(np.asarray(edge_cols, dtype=np.int32))

        # Parameters: kernel (1, E) xavier_uniform (fan_in=E, fan_out=1), bias zeros.
        if key is None:
            key = jax.random.PRNGKey(0)
        bound = float(np.sqrt(6.0 / (E + 1)))
        self.kernel = jax.random.uniform(
            key, (1, E), dtype=jnp.float32, minval=-bound, maxval=bound)
        self.bias = jnp.zeros((1, E), dtype=jnp.float32)

        # Per-generation tuning: v7x has 2 TCs and 64 MiB VMEM, v5e/v6e have
        # 1 TC and 128 MiB VMEM.
        kind = ""
        try:
            kind = jax.devices()[0].device_kind.lower()
        except Exception:
            pass
        self._is_v7 = ("v7" in kind) or ("7x" in kind)
        self._tile_budget = (24 if self._is_v7 else 48) * (1 << 20)
        self._vmem_cap = (56 if self._is_v7 else 100) * (1 << 20)

        # Output lane width: don't pad small fan-outs to 128 lanes (it would
        # inflate the dominant W_eff HBM stream by 128/U); a full-dim last
        # block dimension is legal.
        U = self.units
        self.U_pad = U if U < 128 else _round_up(U, 128)

        # K tile: largest multiple of 128 whose double-buffered bf16 operands +
        # resident f32 output fit the per-generation budget at the max batch tile.
        d128 = _round_up(input_dim, 128)
        tk = 128
        for cand in (8192, 4096, 2048, 1024, 512, 256, 128):
            c = min(cand, d128)
            need = (2 * self._TB_MAX * c * 2        # x tile, bf16, double-buffered
                    + 2 * c * self.U_pad * 2        # W tile, bf16, double-buffered
                    + self._TB_MAX * self.U_pad * 4  # resident f32 output block
                    + 4 * self.U_pad * 4)            # bias (tiny)
            if need <= self._tile_budget:
                tk = c
                break
        self.tk = tk
        self.D_pad = _round_up(input_dim, tk)

        # --- Exact algebraic collapse of adjmat / kernel / reshapemat.
        w_eff = jnp.zeros((U, input_dim), jnp.float32).at[rows, cols].add(self.kernel[0])
        b_eff = jnp.zeros((U,), jnp.float32).at[rows].add(self.bias[0])

        # Pre-transposed, zero-padded, bf16 weight (D_pad, U_pad); f32 bias (1, U_pad).
        w_t = jnp.transpose(w_eff)  # (D, U)
        self.w_t = jnp.pad(
            w_t, ((0, self.D_pad - input_dim), (0, self.U_pad - U))
        ).astype(jnp.bfloat16)
        self.b_eff = jnp.pad(b_eff, (0, self.U_pad - U)).reshape(1, self.U_pad)

    def __call__(self, x):
        B, D = x.shape
        assert D == self.input_dim
        U, U_pad, tk, D_pad = self.units, self.U_pad, self.tk, self.D_pad

        # Batch tiling: pad only to a multiple of 8 and balance the tiles
        # (<= _TB_MAX rows each).  On v7x make sure the "parallel" batch axis
        # has >= 2 tiles so both TensorCores get work.
        B8 = _round_up(B, 8)
        n_bt = _cdiv(B8, self._TB_MAX)
        if self._is_v7 and n_bt == 1 and B8 >= 16:
            n_bt = 2
        tb = _round_up(_cdiv(B8, n_bt), 8)
        B_pad = tb * n_bt

        # Single fused pad + bf16 cast (half-width HBM write). The D remainder is
        # explicitly zero-padded so padded W rows never meet garbage x columns.
        xb = x.astype(jnp.bfloat16)
        if B_pad != B or D_pad != D:
            xb = jnp.pad(xb, ((0, B_pad - B), (0, D_pad - D)))

        grid = (n_bt, D_pad // tk)

        in_specs = [
            pl.BlockSpec((tb, tk), lambda i, k: (i, k)),      # x tile
            pl.BlockSpec((tk, U_pad), lambda i, k: (k, 0)),   # W_eff^T K-slice
        ]
        args = [xb, self.w_t]
        if self.use_bias:
            in_specs.append(pl.BlockSpec((1, U_pad), lambda i, k: (0, 0)))
            args.append(self.b_eff)

        kernel_fn = functools.partial(
            _pc_kernel, use_bias=self.use_bias, activation=self.activation)

        # Explicit scoped-VMEM budget: double-buffered tiles + resident output + slack.
        need = (2 * tb * tk * 2 + 2 * tk * U_pad * 2
                + tb * U_pad * 4 + 4 * U_pad * 4)
        vmem_limit = int(min(max(2 * need, 32 * 1024 * 1024), self._vmem_cap))

        out = pl.pallas_call(
            kernel_fn,
            out_shape=jax.ShapeDtypeStruct((B_pad, U_pad), jnp.float32),
            grid_spec=pltpu.PrefetchScalarGridSpec(
                num_scalar_prefetch=0,
                grid=grid,
                in_specs=in_specs,
                out_specs=pl.BlockSpec((tb, U_pad), lambda i, k: (i, 0)),
            ),
            compiler_params=pltpu.CompilerParams(
                dimension_semantics=("parallel", "arbitrary"),
                vmem_limit_bytes=vmem_limit,
            ),
        )(*args)

        if B_pad != B or U_pad != U:
            out = out[:B, :U]
        return out


def _reference(layer, x):
    """Factored f32 reference matching the original PyTorch forward."""
    D = layer.input_dim
    U = layer.units
    edge_cols = [j for adj in layer.adjlist for j in adj]
    E = len(edge_cols)
    adjmat = np.zeros((E, D), dtype=np.float32)
    adjmat[np.arange(E), np.asarray(edge_cols, dtype=np.int64)] = 1.0
    reshapemat = np.zeros((U, E), dtype=np.float32)
    e = 0
    for i, adj in enumerate(layer.adjlist):
        for _ in adj:
            reshapemat[i, e] = 1.0
            e += 1
    adjmat = jnp.asarray(adjmat)
    reshapemat = jnp.asarray(reshapemat)

    flat_f = x @ adjmat.T
    flat_f2 = flat_f * layer.kernel
    if layer.use_bias:
        flat_f2 = flat_f2 + layer.bias
    out = flat_f2 @ reshapemat.T
    if layer.activation == "relu":
        out = jnp.maximum(out, 0.0)
    elif layer.activation == "tanh":
        out = jnp.tanh(out)
    elif layer.activation is not None:
        out = jax.nn.sigmoid(out)
    return out


if __name__ == "__main__":
    # Small synthetic shapes: batch=8, input_dim=128, 8 output units, 16 edges each.
    B, D = 8, 128
    units, deg = 8, 16
    adjlist = [[(i * 7 + 3 * k) % D for k in range(deg)] for i in range(units)]

    key = jax.random.PRNGKey(0)
    kx, kp = jax.random.split(key)
    x = jax.random.normal(kx, (B, D), dtype=jnp.float32)

    # Path 1: bias + relu.
    layer = PartialConnectionPallas(
        adjlist, activation="relu", use_bias=True, input_dim=D, key=kp)
    out = layer(x)
    jax.block_until_ready(out)
    ref = _reference(layer, x)
    # bf16 operands with f32 accumulation -> loosened tolerance vs f32 reference.
    np.testing.assert_allclose(np.asarray(out), np.asarray(ref), rtol=2e-2, atol=5e-2)

    # Path 2: no bias, no activation.
    layer2 = PartialConnectionPallas(
        adjlist, activation=None, use_bias=False, input_dim=D, key=kp)
    out2 = layer2(x)
    jax.block_until_ready(out2)
    ref2 = _reference(layer2, x)
    np.testing.assert_allclose(np.asarray(out2), np.asarray(ref2), rtol=2e-2, atol=5e-2)

    print("KERNEL_OK")
</pallas_src>

<mosaic_0001>
module attributes {stable_mosaic.version = 11 : i64} {
  func.func @_pc_kernel(%arg0: i32, %arg1: i32, %arg2: memref<8x128xbf16, #tpu.memory_space<vmem>>, %arg3: memref<128x8xbf16, #tpu.memory_space<vmem>>, %arg4: memref<1x8xf32, #tpu.memory_space<vmem>>, %arg5: memref<8x8xf32, #tpu.memory_space<vmem>>) attributes {dimension_semantics = [#tpu.dimension_semantics<parallel>, #tpu.dimension_semantics<arbitrary>], iteration_bounds = array<i64: 1, 1>, scalar_prefetch = 0 : i64, scratch_operands = 0 : i64, tpu.core_type = #tpu.core_type<tc>, window_params = [{transform_indices = @transform_0, window_bounds = array<i64: 8, 128>}, {transform_indices = @transform_1, window_bounds = array<i64: 128, 8>}, {pipeline_mode = #tpu.pipeline_mode<synchronous>, transform_indices = @transform_2, window_bounds = array<i64: 1, 8>}, {transform_indices = @transform_3, window_bounds = array<i64: 8, 8>}]} {
    %c0_i32 = arith.constant 0 : i32
    %0 = arith.cmpi eq, %arg1, %c0_i32 : i32
    %1 = arith.extui %0 : i1 to i32
    %c0_i32_0 = arith.constant 0 : i32
    %2 = arith.cmpi ne, %1, %c0_i32_0 : i32
    scf.if %2 {
      %cst_10 = arith.constant 0.000000e+00 : f32
      %12 = vector.broadcast %cst_10 : f32 to vector<8x8xf32>
      %c0_11 = arith.constant 0 : index
      %c0_12 = arith.constant 0 : index
      %13 = vector.load %arg5[%c0_11, %c0_12] : memref<8x8xf32, #tpu.memory_space<vmem>>, vector<8x8xf32>
      tpu.vector_store %arg5[%c0_11, %c0_12], %12 {strides = array<i32>} : memref<8x8xf32, #tpu.memory_space<vmem>>, vector<8x8xf32>,
    } else {
    }
    %c0 = arith.constant 0 : index
    %c0_1 = arith.constant 0 : index
    %3 = vector.load %arg5[%c0, %c0_1] : memref<8x8xf32, #tpu.memory_space<vmem>>, vector<8x8xf32>
    %c0_2 = arith.constant 0 : index
    %c0_3 = arith.constant 0 : index
    %4 = vector.load %arg2[%c0_2, %c0_3] : memref<8x128xbf16, #tpu.memory_space<vmem>>, vector<8x128xbf16>
    %c0_4 = arith.constant 0 : index
    %c0_5 = arith.constant 0 : index
    %5 = vector.load %arg3[%c0_4, %c0_5] : memref<128x8xbf16, #tpu.memory_space<vmem>>, vector<128x8xbf16>
    %cst = arith.constant dense<0.000000e+00> : vector<8x8xf32>
    %6 = tpu.matmul %4, %5, %cst {dimension_numbers = #tpu.dot_dimension_numbers<[1], [0], [0], [1], [0, 0, 1, 1], [], []>} : vector<8x128xbf16>, vector<128x8xbf16>, vector<8x8xf32> -> vector<8x8xf32>
    %7 = arith.addf %3, %6 : vector<8x8xf32>
    %c0_6 = arith.constant 0 : index
    %c0_7 = arith.constant 0 : index
    %8 = vector.load %arg5[%c0_6, %c0_7] : memref<8x8xf32, #tpu.memory_space<vmem>>, vector<8x8xf32>
    tpu.vector_store %arg5[%c0_6, %c0_7], %7 {strides = array<i32>} : memref<8x8xf32, #tpu.memory_space<vmem>>, vector<8x8xf32>,
    %c0_i32_8 = arith.constant 0 : i32
    %9 = arith.cmpi eq, %arg1, %c0_i32_8 : i32
    %10 = arith.extui %9 : i1 to i32
    %c0_i32_9 = arith.constant 0 : i32
    %11 = arith.cmpi ne, %10, %c0_i32_9 : i32
    scf.if %11 {
      %c0_10 = arith.constant 0 : index
      %c0_11 = arith.constant 0 : index
      %12 = vector.load %arg5[%c0_10, %c0_11] : memref<8x8xf32, #tpu.memory_space<vmem>>, vector<8x8xf32>
      %c0_12 = arith.constant 0 : index
      %c0_13 = arith.constant 0 : index
      %13 = vector.load %arg4[%c0_12, %c0_13] : memref<1x8xf32, #tpu.memory_space<vmem>>, vector<1x8xf32>
      %14 = vector.broadcast %13 : vector<1x8xf32> to vector<8x8xf32>
      %15 = arith.addf %12, %14 : vector<8x8xf32>
      %cst_14 = arith.constant 0.000000e+00 : f32
      %16 = vector.broadcast %cst_14 : f32 to vector<8x8xf32>
      %17 = arith.maximumf %15, %16 : vector<8x8xf32>
      %c0_15 = arith.constant 0 : index
      %c0_16 = arith.constant 0 : index
      %18 = vector.load %arg5[%c0_15, %c0_16] : memref<8x8xf32, #tpu.memory_space<vmem>>, vector<8x8xf32>
      tpu.vector_store %arg5[%c0_15, %c0_16], %17 {strides = array<i32>} : memref<8x8xf32, #tpu.memory_space<vmem>>, vector<8x8xf32>,
    } else {
    }
    return
  }
  func.func @transform_0(%arg0: i32, %arg1: i32) -> (i32, i32) {
    %c0_i32 = arith.constant 0 : i32
    return %arg0, %arg1 : i32, i32
  }
  func.func @transform_1(%arg0: i32, %arg1: i32) -> (i32, i32) {
    %c0_i32 = arith.constant 0 : i32
    %c0_i32_0 = arith.constant 0 : i32
    return %arg1, %c0_i32 : i32, i32
  }
  func.func @transform_2(%arg0: i32, %arg1: i32) -> (i32, i32) {
    %c0_i32 = arith.constant 0 : i32
    %c0_i32_0 = arith.constant 0 : i32
    %c0_i32_1 = arith.constant 0 : i32
    return %c0_i32, %c0_i32_0 : i32, i32
  }
  func.func @transform_3(%arg0: i32, %arg1: i32) -> (i32, i32) {
    %c0_i32 = arith.constant 0 : i32
    %c0_i32_0 = arith.constant 0 : i32
    return %arg0, %c0_i32 : i32, i32
  }
}

</mosaic_0001>

<llo_original>
// kernel: tpu_custom_call.1
$region0: #{tpu_custom_call.1}
  #allocation0 [shape = 'u32[]', space=smem, size = 0x4, offset = 0x4, fixed_abs, tag = 'smem constant byte address 0x4 - core index']
  #allocation1 [shape = 'u32[72,128]{1,0:T(1,128)}', space=vmem, size = 0x9000, scoped, tag = 'internal scratch']
  %s0 = inlined_call_operand.vmem [shape: bf16[8,128], index: 0, kind: input, shape index: {}]
  %s1 = inlined_call_operand.vmem [shape: bf16[128,8], index: 1, kind: input, shape index: {}]
  %s2 = inlined_call_operand.vmem [shape: f32[1,8], index: 2, kind: input, shape index: {}]
  %s3 = inlined_call_operand.hbm [shape: f32[8,8], index: 3, kind: output, shape index: {}]
  %s4 = sld [smem:[#allocation0]]
  $region30: #{tpu_custom_call.1} parent=0
    _
  %s6 = ssub.s32 1, %s4
  %s7 = scalar_select 0, %s6, %s4
  $region1: #{tpu_custom_call.1} parent=0
    #allocation2 [shape = 'u8[4096]{0}', space=vmem, size = 0x1000, scoped, tag = 'output window, operand 0, single buffered']
    #allocation3 [shape = 's32[1]{0}', space=sflag, size = 0x4, scoped, tag = 'scoped memory for tpu_custom_call.1']
    %8 = vsyncpa [#allocation3], 0
    // Predicated region
    $region2: #{tpu_custom_call.1} parent=1 // pred_check
      _
    $region3: #{tpu_custom_call.1} parent=1 // pred_check_branch
      %10 = sbr.rel (0) target = $region5
    $region4: #{tpu_custom_call.1} parent=1 // pred_region
      _
    $region5: #{tpu_custom_call.1} parent=1 // pred_fallthru
      _
    // Predicated region
    $region6: #{tpu_custom_call.1} parent=1 // pred_check
      _
    $region7: #{tpu_custom_call.1} parent=1 // pred_check_branch
      %12 = sbr.rel (0) target = $region9
    $region8: #{tpu_custom_call.1} parent=1 // pred_region
      _
    $region9: #{tpu_custom_call.1} parent=1 // pred_fallthru
      _
    // Predicated region
    $region10: #{tpu_custom_call.1} parent=1 // pred_check
      _
    $region11: #{tpu_custom_call.1} parent=1 // pred_check_branch
      %14 = sbr.rel (0) target = $region13
    $region12: #{tpu_custom_call.1} parent=1 // pred_region
      _
    $region13: #{tpu_custom_call.1} parent=1 // pred_fallthru
      _
    %p15 = scmp.eq.s32.totalorder 0, 0
    // Predicated region
    $region14: #{tpu_custom_call.1} parent=1 // pred_check
      %p16 = pneg %p15
    $region15: #{tpu_custom_call.1} parent=1 // pred_check_branch
      %18 = sbr.rel (%p16) target = $region17
    $region16: #{tpu_custom_call.1} parent=1 // pred_region
      %vm19 = vcmask 64512
      %20 = vst.msk [vmem:[#allocation2] sm:$0xff] %vm19, 0.0
    $region17: #{tpu_custom_call.1} parent=1 // pred_fallthru
      _
    %v21 = vld [vmem:[#allocation2] sm:$0xff]
    %v22 = vld [vmem:[%s0] sm:$0xf]
    %v23 = vld [vmem:[%s1] sm:$0xf]
    %v24 = vld [vmem:[%s1 + $0x4] sm:$0xf]
    %v25 = vld [vmem:[%s1 + $0x8] sm:$0xf]
    %v26 = vld [vmem:[%s1 + $0xc] sm:$0xf]
    %v27 = vld [vmem:[%s1 + $0x10] sm:$0xf]
    %v28 = vld [vmem:[%s1 + $0x14] sm:$0xf]
    %v29 = vld [vmem:[%s1 + $0x18] sm:$0xf]
    %v30 = vld [vmem:[%s1 + $0x1c] sm:$0xf]
    %v31 = vld [vmem:[%s1 + $0x20] sm:$0xf]
    %v32 = vld [vmem:[%s1 + $0x24] sm:$0xf]
    %v33 = vld [vmem:[%s1 + $0x28] sm:$0xf]
    %v34 = vld [vmem:[%s1 + $0x2c] sm:$0xf]
    %v35 = vld [vmem:[%s1 + $0x30] sm:$0xf]
    %v36 = vld [vmem:[%s1 + $0x34] sm:$0xf]
    %v37 = vld [vmem:[%s1 + $0x38] sm:$0xf]
    %v38 = vld [vmem:[%s1 + $0x3c] sm:$0xf]
    %v55 = vunpack.c.l.b16 %v23
    %v56 = vunpack.c.l.b16 %v24
    %v57 = vunpack.c.l.b16 %v25
    %v58 = vunpack.c.l.b16 %v26
    %v59 = vunpack.c.l.b16 %v27
    %v60 = vunpack.c.l.b16 %v28
    %v61 = vunpack.c.l.b16 %v29
    %v62 = vunpack.c.l.b16 %v30
    %v63 = vunpack.c.l.b16 %v31
    %v64 = vunpack.c.l.b16 %v32
    %v65 = vunpack.c.l.b16 %v33
    %v66 = vunpack.c.l.b16 %v34
    %v67 = vunpack.c.l.b16 %v35
    %v68 = vunpack.c.l.b16 %v36
    %v69 = vunpack.c.l.b16 %v37
    %v70 = vunpack.c.l.b16 %v38
    %v71 = vpack.c.b16 %v56, %v55
    %v72 = vpack.c.b16 %v58, %v57
    %v73 = vpack.c.b16 %v60, %v59
    %v74 = vpack.c.b16 %v62, %v61
    %v75 = vpack.c.b16 %v64, %v63
    %v76 = vpack.c.b16 %v66, %v65
    %v77 = vpack.c.b16 %v68, %v67
    %v78 = vpack.c.b16 %v70, %v69
    %87 = vmatpush.bf16.msra.mxu0 %v78
    %88 = vmatpush.bf16.msra.mxu0 %v77
    %89 = vmatpush.bf16.msra.mxu0 %v76
    %90 = vmatpush.bf16.msra.mxu0 %v75
    %91 = vmatpush.bf16.msra.mxu0 %v74
    %92 = vmatpush.bf16.msra.mxu0 %v73
    %93 = vmatpush.bf16.msra.mxu0 %v72
    %94 = vmatpush.bf16.msra.mxu0 %v71
    %95 = vmatmul.bf16.gmra.mxu0 %v22
    %v96 = vpop.f32.mrf.mxu0
    %v97 = vadd.f32 0.0, %v96
    %v98 = vpop.f32.mrf.mxu0
    %99 = vdwg.mxu0
    %v100 = vadd.f32 %v21, %v97
    %vm101 = vcmask 64512
    %102 = vst.msk [vmem:[#allocation2] sm:$0xff] %vm101, %v100
    // Predicated region
    $region18: #{tpu_custom_call.1} parent=1 // pred_check
      %p103 = pneg %p15
    $region19: #{tpu_custom_call.1} parent=1 // pred_check_branch
      %105 = sbr.rel (%p103) target = $region21
    $region20: #{tpu_custom_call.1} parent=1 // pred_region
      %v106 = vld [vmem:[#allocation2] sm:$0xff]
      %v107 = vld [vmem:[%s2] sm:$0x1]
      %v109 = vperm.slane %v107, 0
      %v111 = vadd.f32 %v106, %v109
      %v112 = vmax.f32 %v111, 0.0
      %113 = vst.msk [vmem:[#allocation2] sm:$0xff] %vm101, %v112
    $region21: #{tpu_custom_call.1} parent=1 // pred_fallthru
      _
    // Predicated region
    $region22: #{tpu_custom_call.1} parent=1 // pred_check
      _
    $region23: #{tpu_custom_call.1} parent=1 // pred_check_branch
      %115 = sbr.rel (0) target = $region25
    $region24: #{tpu_custom_call.1} parent=1 // pred_region
      %117 = vsyncadd [#allocation3], 0
      %s119 = sshll.u32 [#allocation2], 4
      %s120 = int_to_ptr.vmem [resolvable:$true] %s119
      %s121 = sshll.u32 %s3, 4
      %s122 = int_to_ptr.hbm [resolvable:$true] %s121
      %124 = dma.vmem_to_hbm [thread:$0]  %s120, 128, %s122, [#allocation3]
    $region25: #{tpu_custom_call.1} parent=1 // pred_fallthru
      _
    // Predicated region
    $region26: #{tpu_custom_call.1} parent=1 // pred_check
      _
    $region27: #{tpu_custom_call.1} parent=1 // pred_check_branch
      %126 = sbr.rel (0) target = $region29
    $region28: #{tpu_custom_call.1} parent=1 // pred_region
      %128 = dma.done [#allocation3], 128
    $region29: #{tpu_custom_call.1} parent=1 // pred_fallthru
      _
    %129 = vsyncpa [#allocation3], 1

</llo_original>
